<compile_context>
chip_gen: v5e
topology: v5e:2x2
jax: 0.10.0
libtpu: 0.0.40
codegen_flags: <defaults>
</compile_context>

<pallas_src>
import functools
import math

import jax
import jax.numpy as jnp
from jax import lax
from jax.experimental import pallas as pl
from jax.experimental.pallas import tpu as pltpu


_VMEM_LIMIT = 48 * 1024 * 1024  # explicit scoped-VMEM budget (fits all TPU gens)
_SQRT_HALF = 0.7071067811865476


def _round_up(x, m):
    return (x + m - 1) // m * m


def _gelu_erf(x):
    # Exact (erf-based) GELU, matching PyTorch F.gelu's default. erf is computed with
    # the Abramowitz & Stegun 7.1.26 polynomial (|err| < 1.5e-7) so the kernel only
    # relies on exp / mul / add / where lowering inside Mosaic.
    z = x * _SQRT_HALF
    za = jnp.abs(z)
    t = 1.0 / (1.0 + 0.3275911 * za)
    poly = ((((1.061405429 * t - 1.453152027) * t + 1.421413741) * t
             - 0.284496736) * t + 0.254829592) * t
    erf_abs = 1.0 - poly * jnp.exp(-(za * za))
    erf = jnp.where(z >= 0, erf_abs, -erf_abs)
    return 0.5 * x * (1.0 + erf)


# ---------------------------------------------------------------------------
# Kernel 1: LayerNorm(ln_1) + fused QKV projection (x @ [Wq|Wk|Wv]^T + b)
# ---------------------------------------------------------------------------
def _ln_qkv_kernel(x_ref, g_ref, b_ref, wqkv_ref, bqkv_ref, qkv_ref, *, eps):
    x = x_ref[0].astype(jnp.float32)                       # (T, D)
    mu = jnp.mean(x, axis=-1, keepdims=True)
    xc = x - mu
    var = jnp.mean(xc * xc, axis=-1, keepdims=True)
    xn = xc * lax.rsqrt(var + eps)
    xn = xn * g_ref[...] + b_ref[...]                      # LN affine, (T, D)
    # weights are pre-transposed & stacked in the wrapper: single (D, 3D) matmul
    out = jnp.dot(xn.astype(wqkv_ref.dtype), wqkv_ref[...],
                  preferred_element_type=jnp.float32) + bqkv_ref[...]
    qkv_ref[0] = out.astype(qkv_ref.dtype)


# ---------------------------------------------------------------------------
# Kernel 2: causal flash attention, heads batched, grid = (B, n_q, n_kv)
# ---------------------------------------------------------------------------
def _flash_attn_kernel(q_ref, k_ref, v_ref, o_ref, m_sc, l_sc, acc_sc, *,
                       sm_scale, block_q, block_k):
    qi = pl.program_id(1)
    ki = pl.program_id(2)

    @pl.when(ki == 0)
    def _init():
        m_sc[...] = jnp.full(m_sc.shape, -1e30, dtype=m_sc.dtype)
        l_sc[...] = jnp.zeros(l_sc.shape, dtype=l_sc.dtype)
        acc_sc[...] = jnp.zeros(acc_sc.shape, dtype=acc_sc.dtype)

    # Skip KV blocks strictly in the causal future of this whole Q block.
    @pl.when(ki * block_k <= qi * block_q + (block_q - 1))
    def _compute():
        q = q_ref[0]                                       # (H, TQ, dk)
        k = k_ref[0]                                       # (H, TK, dk)
        v = v_ref[0]                                       # (H, TK, dk)
        s = jnp.einsum('hqd,hkd->hqk', q, k,
                       preferred_element_type=jnp.float32) * sm_scale   # (H,TQ,TK)

        # causal mask from block offsets (rebuilt per grid step, not per inner loop)
        row = qi * block_q + lax.broadcasted_iota(jnp.int32, (block_q, block_k), 0)
        col = ki * block_k + lax.broadcasted_iota(jnp.int32, (block_q, block_k), 1)
        causal = col <= row                                # (TQ, TK)

        m_prev = m_sc[...]
        m_new = jnp.maximum(m_prev, jnp.max(s, axis=-1, keepdims=True))
        alpha = jnp.exp(m_prev - m_new)
        # mask AFTER exp: no -inf arithmetic anywhere
        p = jnp.where(causal, jnp.exp(s - m_new), 0.0)     # (H,TQ,TK) f32
        l_sc[...] = alpha * l_sc[...] + jnp.sum(p, axis=-1, keepdims=True)
        acc_sc[...] = alpha * acc_sc[...] + jnp.einsum(
            'hqk,hkd->hqd', p.astype(v.dtype), v,
            preferred_element_type=jnp.float32)
        m_sc[...] = m_new

    @pl.when(ki == pl.num_programs(2) - 1)
    def _finalize():
        inv_l = pl.reciprocal(l_sc[...], approx=True)      # EUP slot, ~free
        o_ref[0] = (acc_sc[...] * inv_l).astype(o_ref.dtype)


# ---------------------------------------------------------------------------
# Kernel 3: W_o projection + residual + LayerNorm(ln_2) + FFN(GELU) + residual
# ---------------------------------------------------------------------------
def _out_ffn_kernel(x_ref, a_ref, wo_ref, bo_ref, g2_ref, be2_ref,
                    w1_ref, b1_ref, w2_ref, b2_ref, y_ref, *, eps):
    x = x_ref[0].astype(jnp.float32)                       # residual stream (T, D)
    a = a_ref[0]                                           # attention output (T, D)

    proj = jnp.dot(a, wo_ref[...], preferred_element_type=jnp.float32) + bo_ref[...]
    x1 = x + proj                                          # residual add #1

    mu = jnp.mean(x1, axis=-1, keepdims=True)
    xc = x1 - mu
    var = jnp.mean(xc * xc, axis=-1, keepdims=True)
    h = xc * lax.rsqrt(var + eps) * g2_ref[...] + be2_ref[...]

    h1 = jnp.dot(h.astype(w1_ref.dtype), w1_ref[...],
                 preferred_element_type=jnp.float32) + b1_ref[...]
    h1 = _gelu_erf(h1)
    ff = jnp.dot(h1.astype(w2_ref.dtype), w2_ref[...],
                 preferred_element_type=jnp.float32) + b2_ref[...]

    y_ref[0] = (x1 + ff).astype(y_ref.dtype)               # residual add #2


# ---------------------------------------------------------------------------
# Wrapper
# ---------------------------------------------------------------------------
def transformer_block(x, params, *, n_heads, eps=1e-5, block=128):
    B, S, D = x.shape
    assert D % n_heads == 0, "d_model must be divisible by n_heads"
    dk = D // n_heads
    F = params['w1'].shape[0]
    dtype = x.dtype

    # ---- weight preprocessing (once, in the wrapper: no in-kernel transposes) ----
    wqkv_t = jnp.concatenate([params['wq'].T, params['wk'].T, params['wv'].T], axis=1)
    bqkv = jnp.concatenate([params['bq'], params['bk'], params['bv']])[None, :]
    wo_t = params['wo'].T
    w1_t = params['w1'].T
    w2_t = params['w2'].T
    bo = params['bo'][None, :]
    b1 = params['b1'][None, :]
    b2 = params['b2'][None, :]
    g1 = params['ln1_g'][None, :]
    be1 = params['ln1_b'][None, :]
    g2 = params['ln2_g'][None, :]
    be2 = params['ln2_b'][None, :]

    # ---- sequence tiling / padding (padded keys are causally masked away) ----
    T = min(block, _round_up(S, 8))
    Sp = _round_up(S, T)
    xp = jnp.pad(x, ((0, 0), (0, Sp - S), (0, 0))) if Sp != S else x
    n_s = Sp // T

    # ---- kernel 1: LN1 + fused QKV projection ----
    qkv = pl.pallas_call(
        functools.partial(_ln_qkv_kernel, eps=eps),
        out_shape=jax.ShapeDtypeStruct((B, Sp, 3 * D), dtype),
        grid_spec=pltpu.PrefetchScalarGridSpec(
            num_scalar_prefetch=0, grid=(B, n_s),
            in_specs=[
                pl.BlockSpec((1, T, D), lambda b, s: (b, s, 0)),
                pl.BlockSpec((1, D), lambda b, s: (0, 0)),
                pl.BlockSpec((1, D), lambda b, s: (0, 0)),
                pl.BlockSpec((D, 3 * D), lambda b, s: (0, 0)),
                pl.BlockSpec((1, 3 * D), lambda b, s: (0, 0)),
            ],
            out_specs=pl.BlockSpec((1, T, 3 * D), lambda b, s: (b, s, 0)),
        ),
        compiler_params=pltpu.CompilerParams(
            dimension_semantics=("parallel", "parallel"),
            vmem_limit_bytes=_VMEM_LIMIT),
    )(xp, g1, be1, wqkv_t, bqkv)

    # wrapper-side layout plumbing: split heads, head-major layout (contiguous dk
    # blocks for DMA, head axis leading so in-kernel einsums need no transpose)
    qkv = qkv.reshape(B, Sp, 3, n_heads, dk)
    qkv = jnp.transpose(qkv, (2, 0, 3, 1, 4))              # (3, B, H, Sp, dk)
    q, k, v = qkv[0], qkv[1], qkv[2]

    # ---- kernel 2: causal flash attention ----
    n_q = Sp // T
    n_kv = Sp // T
    sm_scale = 1.0 / math.sqrt(dk)
    attn = pl.pallas_call(
        functools.partial(_flash_attn_kernel, sm_scale=sm_scale,
                          block_q=T, block_k=T),
        out_shape=jax.ShapeDtypeStruct((B, n_heads, Sp, dk), dtype),
        grid_spec=pltpu.PrefetchScalarGridSpec(
            num_scalar_prefetch=0, grid=(B, n_q, n_kv),
            in_specs=[
                pl.BlockSpec((1, n_heads, T, dk), lambda b, qi, ki: (b, 0, qi, 0)),
                pl.BlockSpec((1, n_heads, T, dk), lambda b, qi, ki: (b, 0, ki, 0)),
                pl.BlockSpec((1, n_heads, T, dk), lambda b, qi, ki: (b, 0, ki, 0)),
            ],
            out_specs=pl.BlockSpec((1, n_heads, T, dk), lambda b, qi, ki: (b, 0, qi, 0)),
            scratch_shapes=[
                pltpu.VMEM((n_heads, T, 1), jnp.float32),   # running max
                pltpu.VMEM((n_heads, T, 1), jnp.float32),   # running sum
                pltpu.VMEM((n_heads, T, dk), jnp.float32),  # output accumulator
            ],
        ),
        compiler_params=pltpu.CompilerParams(
            dimension_semantics=("parallel", "parallel", "arbitrary"),
            vmem_limit_bytes=_VMEM_LIMIT),
        cost_estimate=pl.CostEstimate(
            flops=4 * B * n_heads * Sp * Sp * dk,
            transcendentals=B * n_heads * Sp * Sp,
            bytes_accessed=4 * B * n_heads * Sp * dk * x.dtype.itemsize),
    )(q, k, v)

    # back to lane-dense (B, Sp, D) for the output projection / FFN kernel
    attn = jnp.transpose(attn, (0, 2, 1, 3)).reshape(B, Sp, D)

    # ---- kernel 3: W_o + residual + LN2 + FFN + residual ----
    # NOTE: weight BlockSpecs have constant index maps (fetched once / resident);
    # on v7x (64 MiB VMEM) large D/d_ff configs should additionally tile d_ff or
    # use bf16 weights.
    y = pl.pallas_call(
        functools.partial(_out_ffn_kernel, eps=eps),
        out_shape=jax.ShapeDtypeStruct((B, Sp, D), dtype),
        grid_spec=pltpu.PrefetchScalarGridSpec(
            num_scalar_prefetch=0, grid=(B, n_s),
            in_specs=[
                pl.BlockSpec((1, T, D), lambda b, s: (b, s, 0)),   # residual x
                pl.BlockSpec((1, T, D), lambda b, s: (b, s, 0)),   # attn output
                pl.BlockSpec((D, D), lambda b, s: (0, 0)),         # Wo^T
                pl.BlockSpec((1, D), lambda b, s: (0, 0)),         # bo
                pl.BlockSpec((1, D), lambda b, s: (0, 0)),         # ln2 gamma
                pl.BlockSpec((1, D), lambda b, s: (0, 0)),         # ln2 beta
                pl.BlockSpec((D, F), lambda b, s: (0, 0)),         # W1^T
                pl.BlockSpec((1, F), lambda b, s: (0, 0)),         # b1
                pl.BlockSpec((F, D), lambda b, s: (0, 0)),         # W2^T
                pl.BlockSpec((1, D), lambda b, s: (0, 0)),         # b2
            ],
            out_specs=pl.BlockSpec((1, T, D), lambda b, s: (b, s, 0)),
        ),
        compiler_params=pltpu.CompilerParams(
            dimension_semantics=("parallel", "parallel"),
            vmem_limit_bytes=_VMEM_LIMIT),
    )(xp, attn, wo_t, bo, g2, be2, w1_t, b1, w2_t, b2)

    return y[:, :S] if Sp != S else y


# ---------------------------------------------------------------------------
# Pure-JAX reference (mirrors the PyTorch module in eval mode)
# ---------------------------------------------------------------------------
def _layernorm_ref(x, g, b, eps):
    mu = jnp.mean(x, axis=-1, keepdims=True)
    var = jnp.mean((x - mu) ** 2, axis=-1, keepdims=True)
    return (x - mu) / jnp.sqrt(var + eps) * g + b


def _reference(x, p, n_heads, eps):
    B, S, D = x.shape
    dk = D // n_heads
    h = _layernorm_ref(x, p['ln1_g'], p['ln1_b'], eps)
    q = h @ p['wq'].T + p['bq']
    k = h @ p['wk'].T + p['bk']
    v = h @ p['wv'].T + p['bv']
    q = q.reshape(B, S, n_heads, dk).transpose(0, 2, 1, 3)
    k = k.reshape(B, S, n_heads, dk).transpose(0, 2, 1, 3)
    v = v.reshape(B, S, n_heads, dk).transpose(0, 2, 1, 3)
    s = jnp.einsum('bhqd,bhkd->bhqk', q, k) / math.sqrt(dk)
    causal = jnp.tril(jnp.ones((S, S), dtype=bool))
    s = jnp.where(causal, s, -jnp.inf)
    w = jax.nn.softmax(s, axis=-1)
    o = jnp.einsum('bhqk,bhkd->bhqd', w, v)
    o = o.transpose(0, 2, 1, 3).reshape(B, S, D)
    x = x + (o @ p['wo'].T + p['bo'])
    h2 = _layernorm_ref(x, p['ln2_g'], p['ln2_b'], eps)
    ff = jax.nn.gelu(h2 @ p['w1'].T + p['b1'], approximate=False) @ p['w2'].T + p['b2']
    return x + ff


if __name__ == "__main__":
    # Small config: batch=2, seq=16, d_model=32, n_heads=4 (d_k=8), d_ff=128.
    # block=8 -> 2 query tiles x 2 KV tiles, exercising the online-softmax path
    # and the causal block-skip.
    B, S, D, H, F = 2, 16, 32, 4, 128
    eps = 1e-5

    key = jax.random.PRNGKey(0)
    ks = jax.random.split(key, 17)

    def uni(k, shape, fan_in):
        bound = 1.0 / math.sqrt(fan_in)
        return jax.random.uniform(k, shape, jnp.float32, -bound, bound)

    params = {
        'ln1_g': 1.0 + 0.1 * jax.random.normal(ks[0], (D,), jnp.float32),
        'ln1_b': 0.1 * jax.random.normal(ks[1], (D,), jnp.float32),
        'wq': uni(ks[2], (D, D), D), 'bq': uni(ks[3], (D,), D),
        'wk': uni(ks[4], (D, D), D), 'bk': uni(ks[5], (D,), D),
        'wv': uni(ks[6], (D, D), D), 'bv': uni(ks[7], (D,), D),
        'wo': uni(ks[8], (D, D), D), 'bo': uni(ks[9], (D,), D),
        'ln2_g': 1.0 + 0.1 * jax.random.normal(ks[10], (D,), jnp.float32),
        'ln2_b': 0.1 * jax.random.normal(ks[11], (D,), jnp.float32),
        'w1': uni(ks[12], (F, D), D), 'b1': uni(ks[13], (F,), D),
        'w2': uni(ks[14], (D, F), F), 'b2': uni(ks[15], (D,), F),
    }
    x = jax.random.normal(ks[16], (B, S, D), jnp.float32)

    y = transformer_block(x, params, n_heads=H, eps=eps, block=8)
    y = jax.block_until_ready(y)

    ref = _reference(x, params, H, eps)
    assert y.shape == (B, S, D)
    err = float(jnp.max(jnp.abs(y - ref)))
    # Tolerance budget: EUP approximate reciprocal in the softmax finalize plus the
    # flash-style reassociation; would need further loosening for bf16 inputs.
    assert jnp.allclose(y, ref, atol=1e-2, rtol=1e-2), f"mismatch vs reference: {err}"
    print("KERNEL_OK")
</pallas_src>

<mosaic_0001>
module attributes {stable_mosaic.version = 11 : i64} {
  func.func @_ln_qkv_kernel(%arg0: i32, %arg1: i32, %arg2: memref<1x8x32xf32, #tpu.memory_space<vmem>>, %arg3: memref<1x32xf32, #tpu.memory_space<vmem>>, %arg4: memref<1x32xf32, #tpu.memory_space<vmem>>, %arg5: memref<32x96xf32, #tpu.memory_space<vmem>>, %arg6: memref<1x96xf32, #tpu.memory_space<vmem>>, %arg7: memref<1x8x96xf32, #tpu.memory_space<vmem>>) attributes {dimension_semantics = [#tpu.dimension_semantics<parallel>, #tpu.dimension_semantics<parallel>], iteration_bounds = array<i64: 2, 2>, scalar_prefetch = 0 : i64, scratch_operands = 0 : i64, tpu.core_type = #tpu.core_type<tc>, window_params = [{transform_indices = @transform_0, window_bounds = array<i64: 1, 8, 32>}, {pipeline_mode = #tpu.pipeline_mode<synchronous>, transform_indices = @transform_1, window_bounds = array<i64: 1, 32>}, {pipeline_mode = #tpu.pipeline_mode<synchronous>, transform_indices = @transform_2, window_bounds = array<i64: 1, 32>}, {pipeline_mode = #tpu.pipeline_mode<synchronous>, transform_indices = @transform_3, window_bounds = array<i64: 32, 96>}, {pipeline_mode = #tpu.pipeline_mode<synchronous>, transform_indices = @transform_4, window_bounds = array<i64: 1, 96>}, {transform_indices = @transform_5, window_bounds = array<i64: 1, 8, 96>}]} {
    %c0 = arith.constant 0 : index
    %c0_0 = arith.constant 0 : index
    %c0_1 = arith.constant 0 : index
    %0 = vector.load %arg2[%c0, %c0_0, %c0_1] : memref<1x8x32xf32, #tpu.memory_space<vmem>>, vector<1x8x32xf32>
    %1 = vector.shape_cast %0 : vector<1x8x32xf32> to vector<8x32xf32>
    %cst = arith.constant dense<0.000000e+00> : vector<8xf32>
    %2 = vector.multi_reduction <add>, %1, %cst [1] : vector<8x32xf32> to vector<8xf32>
    %3 = vector.shape_cast %2 : vector<8xf32> to vector<8x1xf32>
    %cst_2 = arith.constant 3.200000e+01 : f32
    %4 = vector.broadcast %cst_2 : f32 to vector<8x1xf32>
    %5 = arith.divf %3, %4 : vector<8x1xf32>
    %6 = vector.broadcast %5 : vector<8x1xf32> to vector<8x32xf32>
    %7 = arith.subf %1, %6 : vector<8x32xf32>
    %8 = arith.mulf %7, %7 : vector<8x32xf32>
    %cst_3 = arith.constant dense<0.000000e+00> : vector<8xf32>
    %9 = vector.multi_reduction <add>, %8, %cst_3 [1] : vector<8x32xf32> to vector<8xf32>
    %10 = vector.shape_cast %9 : vector<8xf32> to vector<8x1xf32>
    %cst_4 = arith.constant 3.200000e+01 : f32
    %11 = vector.broadcast %cst_4 : f32 to vector<8x1xf32>
    %12 = arith.divf %10, %11 : vector<8x1xf32>
    %cst_5 = arith.constant 9.99999974E-6 : f32
    %13 = vector.broadcast %cst_5 : f32 to vector<8x1xf32>
    %14 = arith.addf %12, %13 : vector<8x1xf32>
    %15 = math.rsqrt %14 : vector<8x1xf32>
    %16 = vector.broadcast %15 : vector<8x1xf32> to vector<8x32xf32>
    %17 = arith.mulf %7, %16 : vector<8x32xf32>
    %c0_6 = arith.constant 0 : index
    %c0_7 = arith.constant 0 : index
    %18 = vector.load %arg3[%c0_6, %c0_7] : memref<1x32xf32, #tpu.memory_space<vmem>>, vector<1x32xf32>
    %19 = vector.broadcast %18 : vector<1x32xf32> to vector<8x32xf32>
    %20 = arith.mulf %17, %19 : vector<8x32xf32>
    %c0_8 = arith.constant 0 : index
    %c0_9 = arith.constant 0 : index
    %21 = vector.load %arg4[%c0_8, %c0_9] : memref<1x32xf32, #tpu.memory_space<vmem>>, vector<1x32xf32>
    %22 = vector.broadcast %21 : vector<1x32xf32> to vector<8x32xf32>
    %23 = arith.addf %20, %22 : vector<8x32xf32>
    %c0_10 = arith.constant 0 : index
    %c0_11 = arith.constant 0 : index
    %24 = vector.load %arg5[%c0_10, %c0_11] : memref<32x96xf32, #tpu.memory_space<vmem>>, vector<32x96xf32>
    %cst_12 = arith.constant dense<0.000000e+00> : vector<8x96xf32>
    %25 = tpu.matmul %23, %24, %cst_12 {dimension_numbers = #tpu.dot_dimension_numbers<[1], [0], [0], [1], [0, 0, 1, 1], [], []>} : vector<8x32xf32>, vector<32x96xf32>, vector<8x96xf32> -> vector<8x96xf32>
    %c0_13 = arith.constant 0 : index
    %c0_14 = arith.constant 0 : index
    %26 = vector.load %arg6[%c0_13, %c0_14] : memref<1x96xf32, #tpu.memory_space<vmem>>, vector<1x96xf32>
    %27 = vector.broadcast %26 : vector<1x96xf32> to vector<8x96xf32>
    %28 = arith.addf %25, %27 : vector<8x96xf32>
    %c0_15 = arith.constant 0 : index
    %c0_16 = arith.constant 0 : index
    %c0_17 = arith.constant 0 : index
    %29 = vector.load %arg7[%c0_15, %c0_16, %c0_17] : memref<1x8x96xf32, #tpu.memory_space<vmem>>, vector<1x8x96xf32>
    %30 = vector.shape_cast %29 : vector<1x8x96xf32> to vector<8x96xf32>
    %31 = vector.shape_cast %28 : vector<8x96xf32> to vector<1x8x96xf32>
    tpu.vector_store %arg7[%c0_15, %c0_16, %c0_17], %31 {strides = array<i32>} : memref<1x8x96xf32, #tpu.memory_space<vmem>>, vector<1x8x96xf32>,
    return
  }
  func.func @transform_0(%arg0: i32, %arg1: i32) -> (i32, i32, i32) {
    %c0_i32 = arith.constant 0 : i32
    %c0_i32_0 = arith.constant 0 : i32
    return %arg0, %arg1, %c0_i32 : i32, i32, i32
  }
  func.func @transform_1(%arg0: i32, %arg1: i32) -> (i32, i32) {
    %c0_i32 = arith.constant 0 : i32
    %c0_i32_0 = arith.constant 0 : i32
    %c0_i32_1 = arith.constant 0 : i32
    return %c0_i32, %c0_i32_0 : i32, i32
  }
  func.func @transform_2(%arg0: i32, %arg1: i32) -> (i32, i32) {
    %c0_i32 = arith.constant 0 : i32
    %c0_i32_0 = arith.constant 0 : i32
    %c0_i32_1 = arith.constant 0 : i32
    return %c0_i32, %c0_i32_0 : i32, i32
  }
  func.func @transform_3(%arg0: i32, %arg1: i32) -> (i32, i32) {
    %c0_i32 = arith.constant 0 : i32
    %c0_i32_0 = arith.constant 0 : i32
    %c0_i32_1 = arith.constant 0 : i32
    return %c0_i32, %c0_i32_0 : i32, i32
  }
  func.func @transform_4(%arg0: i32, %arg1: i32) -> (i32, i32) {
    %c0_i32 = arith.constant 0 : i32
    %c0_i32_0 = arith.constant 0 : i32
    %c0_i32_1 = arith.constant 0 : i32
    return %c0_i32, %c0_i32_0 : i32, i32
  }
  func.func @transform_5(%arg0: i32, %arg1: i32) -> (i32, i32, i32) {
    %c0_i32 = arith.constant 0 : i32
    %c0_i32_0 = arith.constant 0 : i32
    return %arg0, %arg1, %c0_i32 : i32, i32, i32
  }
}

</mosaic_0001>

<llo_original>
// kernel: tpu_custom_call.1
$region0: #{tpu_custom_call.1}
  #allocation0 [shape = 'u32[]', space=smem, size = 0x4, offset = 0x4, fixed_abs, tag = 'smem constant byte address 0x4 - core index']
  #allocation1 [shape = 'u32[72,128]{1,0:T(1,128)}', space=vmem, size = 0x9000, scoped, tag = 'internal scratch']
  %s0 = inlined_call_operand.hbm [shape: f32[2,16,32], index: 0, kind: input, shape index: {}]
  %s1 = inlined_call_operand.hbm [shape: f32[1,32], index: 1, kind: input, shape index: {}]
  %s2 = inlined_call_operand.vmem [shape: f32[1,32], index: 2, kind: input, shape index: {}]
  %s3 = inlined_call_operand.hbm [shape: f32[32,96], index: 3, kind: input, shape index: {}]
  %s4 = inlined_call_operand.vmem [shape: f32[1,96], index: 4, kind: input, shape index: {}]
  %s5 = inlined_call_operand.hbm [shape: f32[2,16,96], index: 5, kind: output, shape index: {}]
  %s6 = sld [smem:[#allocation0]]
  $region65: #{tpu_custom_call.1} parent=0
    _
  %s8 = ssub.s32 1, %s6
  %s9 = scalar_select 0, %s8, %s6
  $region1: #{tpu_custom_call.1} parent=0
    #allocation2 [shape = 'u8[8192]{0}', space=vmem, size = 0x2000, scoped, tag = 'input window, operand 0']
    #allocation3 [shape = 's32[2]{0}', space=sflag, size = 0x8, scoped, tag = 'scoped memory for tpu_custom_call.1']
    #allocation4 [shape = 's32[2]{0}', space=sflag, size = 0x8, scoped, tag = 'scoped memory for tpu_custom_call.1']
    #allocation5 [shape = 'u8[512]{0}', space=vmem, size = 0x400, scoped, tag = 'input window, operand 1, single buffered']
    #allocation6 [shape = 's32[1]{0}', space=sflag, size = 0x4, scoped, tag = 'scoped memory for tpu_custom_call.1']
    #allocation7 [shape = 'u8[16384]{0}', space=vmem, size = 0x4000, scoped, tag = 'input window, operand 3, single buffered']
    #allocation8 [shape = 'u8[8192]{0}', space=vmem, size = 0x2000, scoped, tag = 'output window, operand 0']
    %10 = vsyncpa [#allocation3], 0
    %s11 = scalar_lea.sflag [#allocation3], 1
    %12 = vsyncpa %s11, 0
    %13 = vsyncpa [#allocation6], 0
    %14 = vsyncpa [#allocation4], 0
    %s15 = scalar_lea.sflag [#allocation4], 1
    %16 = vsyncpa %s15, 0
    loop: start=0, step=1, limit=6
    $region2: #{tpu_custom_call.1} parent=1 // loop_pre_header
      _
    $region3: #{tpu_custom_call.1} parent=1 // loop_header
      %s18 = sphi 0, %s22
      %p19 = scmp.ge.s32.totalorder %s18, 6
      %s25 = sphi 0, %s37
      %s26 = sphi 0, %s33
      %s27 = sphi 0, %s25
      %s28 = sphi 0, %s26
      %s29 = sphi 0, %s27
      %s30 = sphi 0, %s28
      %s42 = sphi 0, %s44
      %s45 = sphi 0, %s42
      %s46 = sphi 0, %s45
      %s62 = sphi 0, %s46
      %s66 = sphi 0, %s66
      %s68 = sphi 0, %s66
      %s69 = sphi 0, %s68
      %s83 = sphi 0, %s69
      %s87 = sphi 0, %s87
      %s89 = sphi 0, %s87
      %s90 = sphi 0, %s89
      %s104 = sphi 0, %s90
      %s108 = sphi 0, %s108
      %s110 = sphi 0, %s108
      %s111 = sphi 0, %s110
      %s125 = sphi 0, %s111
      %s129 = sphi 0, %s129
      %s131 = sphi 0, %s129
      %s132 = sphi 0, %s131
      %s146 = sphi 0, %s132
      %s154 = sphi 0, %s156
      %s157 = sphi 0, %s154
      %s158 = sphi 0, %s157
      %s174 = sphi 0, %s158
    $region4: #{tpu_custom_call.1} parent=1 // loop_header_branch
      %21 = sbr.rel (%p19) target = $region8
    $region5: #{tpu_custom_call.1} parent=1 // loop_body
      %s23 = ssub.s32 %s18, 1
      %s24 = ssub.s32 %s18, 2
      %s31 = sadd.s32 1, %s26
      %p32 = scmp.ge.s32.totalorder %s31, 2
      %s33 = scalar_select %p32, 0, %s31
      %s34 = sadd.s32 1, %s25
      %s35 = scalar_select %p32, %s34, %s25
      %p36 = scmp.ge.s32.totalorder %s35, 2
      %s37 = scalar_select %p36, 0, %s35
      %s38 = ssub.s32 %s25, %s37
      %s39 = ssub.s32 %s26, %s33
      %s40 = sor.u32 %s38, %s39
      %p41 = scmp.eq.s32.totalorder %s40, 0
      %s43 = sadd.s32 %s42, 1
      %s44 = scalar_select %p41, %s42, %s43
      %p47 = pneg %p41
      %p48 = scmp.eq.s32.totalorder %s18, 3
      %p49 = por %p47, %p48
      %p50 = scmp.ne.s32.totalorder %s42, %s45
      %p51 = scmp.eq.s32.totalorder %s18, 0
      %p52 = por %p50, %p51
      %p53 = scmp.ne.s32.totalorder %s42, %s45
      %p54 = scmp.eq.s32.totalorder %s23, 3
      %p55 = por %p53, %p54
      %p56 = scmp.ne.s32.totalorder %s45, %s46
      %p57 = scmp.eq.s32.totalorder %s23, 0
      %p58 = por %p56, %p57
      %p59 = scmp.ne.s32.totalorder %s45, %s46
      %p60 = scmp.eq.s32.totalorder %s24, 3
      %p61 = por %p59, %p60
      %p63 = scmp.ne.s32.totalorder %s46, %s62
      %p64 = scmp.eq.s32.totalorder %s24, 0
      %p65 = por %p63, %p64
      %s67 = sadd.s32 %s66, 1
      %p70 = scmp.eq.s32.totalorder %s18, 3
      %p71 = scmp.ne.s32.totalorder %s66, %s68
      %p72 = scmp.eq.s32.totalorder %s18, 0
      %p73 = por %p71, %p72
      %p74 = scmp.ne.s32.totalorder %s66, %s68
      %p75 = scmp.eq.s32.totalorder %s23, 3
      %p76 = por %p74, %p75
      %p77 = scmp.ne.s32.totalorder %s68, %s69
      %p78 = scmp.eq.s32.totalorder %s23, 0
      %p79 = por %p77, %p78
      %p80 = scmp.ne.s32.totalorder %s68, %s69
      %p81 = scmp.eq.s32.totalorder %s24, 3
      %p82 = por %p80, %p81
      %p84 = scmp.ne.s32.totalorder %s69, %s83
      %p85 = scmp.eq.s32.totalorder %s24, 0
      %p86 = por %p84, %p85
      %s88 = sadd.s32 %s87, 1
      %p91 = scmp.eq.s32.totalorder %s18, 3
      %p92 = scmp.ne.s32.totalorder %s87, %s89
      %p93 = scmp.eq.s32.totalorder %s18, 0
      %p94 = por %p92, %p93
      %p95 = scmp.ne.s32.totalorder %s87, %s89
      %p96 = scmp.eq.s32.totalorder %s23, 3
      %p97 = por %p95, %p96
      %p98 = scmp.ne.s32.totalorder %s89, %s90
      %p99 = scmp.eq.s32.totalorder %s23, 0
      %p100 = por %p98, %p99
      %p101 = scmp.ne.s32.totalorder %s89, %s90
      %p102 = scmp.eq.s32.totalorder %s24, 3
      %p103 = por %p101, %p102
      %p105 = scmp.ne.s32.totalorder %s90, %s104
      %p106 = scmp.eq.s32.totalorder %s24, 0
      %p107 = por %p105, %p106
      %s109 = sadd.s32 %s108, 1
      %p112 = scmp.eq.s32.totalorder %s18, 3
      %p113 = scmp.ne.s32.totalorder %s108, %s110
      %p114 = scmp.eq.s32.totalorder %s18, 0
      %p115 = por %p113, %p114
      %p116 = scmp.ne.s32.totalorder %s108, %s110
      %p117 = scmp.eq.s32.totalorder %s23, 3
      %p118 = por %p116, %p117
      %p119 = scmp.ne.s32.totalorder %s110, %s111
      %p120 = scmp.eq.s32.totalorder %s23, 0
      %p121 = por %p119, %p120
      %p122 = scmp.ne.s32.totalorder %s110, %s111
      %p123 = scmp.eq.s32.totalorder %s24, 3
      %p124 = por %p122, %p123
      %p126 = scmp.ne.s32.totalorder %s111, %s125
      %p127 = scmp.eq.s32.totalorder %s24, 0
      %p128 = por %p126, %p127
      %s130 = sadd.s32 %s129, 1
      %p133 = scmp.eq.s32.totalorder %s18, 3
      %p134 = scmp.ne.s32.totalorder %s129, %s131
      %p135 = scmp.eq.s32.totalorder %s18, 0
      %p136 = por %p134, %p135
      %p137 = scmp.ne.s32.totalorder %s129, %s131
      %p138 = scmp.eq.s32.totalorder %s23, 3
      %p139 = por %p137, %p138
      %p140 = scmp.ne.s32.totalorder %s131, %s132
      %p141 = scmp.eq.s32.totalorder %s23, 0
      %p142 = por %p140, %p141
      %p143 = scmp.ne.s32.totalorder %s131, %s132
      %p144 = scmp.eq.s32.totalorder %s24, 3
      %p145 = por %p143, %p144
      %p147 = scmp.ne.s32.totalorder %s132, %s146
      %p148 = scmp.eq.s32.totalorder %s24, 0
      %p149 = por %p147, %p148
      %s150 = ssub.s32 %s25, %s37
      %s151 = ssub.s32 %s26, %s33
      %s152 = sor.u32 %s150, %s151
      %p153 = scmp.eq.s32.totalorder %s152, 0
      %s155 = sadd.s32 %s154, 1
      %s156 = scalar_select %p153, %s154, %s155
      %p159 = pneg %p153
      %p160 = scmp.eq.s32.totalorder %s18, 3
      %p161 = por %p159, %p160
      %p162 = scmp.ne.s32.totalorder %s154, %s157
      %p163 = scmp.eq.s32.totalorder %s18, 0
      %p164 = por %p162, %p163
      %p165 = scmp.ne.s32.totalorder %s154, %s157
      %p166 = scmp.eq.s32.totalorder %s23, 3
      %p167 = por %p165, %p166
      %p168 = scmp.ne.s32.totalorder %s157, %s158
      %p169 = scmp.eq.s32.totalorder %s23, 0
      %p170 = por %p168, %p169
      %p171 = scmp.ne.s32.totalorder %s157, %s158
      %p172 = scmp.eq.s32.totalorder %s24, 3
      %p173 = por %p171, %p172
      %p175 = scmp.ne.s32.totalorder %s158, %s174
      %p176 = scmp.eq.s32.totalorder %s24, 0
      %p177 = por %p175, %p176
      %p178 = scmp.le.s32.totalorder 1, %s18
      %p179 = scmp.lt.s32.totalorder %s18, 5
      %p180 = pnand %p178, %p179
      %p181 = pneg %p180
      // Predicated region
      $region9: #{tpu_custom_call.1} parent=5 // pred_check
        _
      $region10: #{tpu_custom_call.1} parent=5 // pred_check_branch
        %183 = sbr.rel (%p180) target = $region12
      $region11: #{tpu_custom_call.1} parent=5 // pred_region
        %s184 = ssub.s32 %s18, 1
        // Predicated region
        $region13: #{tpu_custom_call.1} parent=11 // pred_check
          %p185 = pneg %p79
        $region14: #{tpu_custom_call.1} parent=11 // pred_check_branch
          %187 = sbr.rel (%p185) target = $region16
        $region15: #{tpu_custom_call.1} parent=11 // pred_region
          %189 = vsyncadd [#allocation6], 0
          %s191 = sshll.u32 %s1, 4
          %s192 = int_to_ptr.hbm [resolvable:$true] %s191
          %s193 = sshll.u32 [#allocation5], 4
          %s194 = int_to_ptr.vmem [resolvable:$true] %s193
          %196 = dma.hbm_to_vmem [thread:$0]  %s192, 16, %s194, [#allocation6]
        $region16: #{tpu_custom_call.1} parent=11 // pred_fallthru
          _
        // Predicated region
        $region17: #{tpu_custom_call.1} parent=11 // pred_check
          %p197 = pneg %p100
        $region18: #{tpu_custom_call.1} parent=11 // pred_check_branch
          %199 = sbr.rel (%p197) target = $region20
        $region19: #{tpu_custom_call.1} parent=11 // pred_region
          _
        $region20: #{tpu_custom_call.1} parent=11 // pred_fallthru
          _
        // Predicated region
        $region21: #{tpu_custom_call.1} parent=11 // pred_check
          %p200 = pneg %p121
        $region22: #{tpu_custom_call.1} parent=11 // pred_check_branch
          %202 = sbr.rel (%p200) target = $region24
        $region23: #{tpu_custom_call.1} parent=11 // pred_region
          %204 = vsyncadd [#allocation6], 0
          %s205 = sshll.u32 %s3, 4
          %s206 = int_to_ptr.hbm [resolvable:$true] %s205
          %s207 = sshll.u32 [#allocation7], 4
          %s208 = int_to_ptr.vmem [resolvable:$true] %s207
          %213 = dma.hbm_to_vmem [thread:$0]  %s206, 512, %s208, [#allocation6], 128, 128, 8
        $region24: #{tpu_custom_call.1} parent=11 // pred_fallthru
          _
        // Predicated region
        $region25: #{tpu_custom_call.1} parent=11 // pred_check
          %p214 = pneg %p142
        $region26: #{tpu_custom_call.1} parent=11 // pred_check_branch
          %216 = sbr.rel (%p214) target = $region28
        $region27: #{tpu_custom_call.1} parent=11 // pred_region
          _
        $region28: #{tpu_custom_call.1} parent=11 // pred_fallthru
          _
      $region12: #{tpu_custom_call.1} parent=5 // pred_fallthru
        _
      %p217 = scmp.lt.s32.totalorder %s18, 4
      // Predicated region
      $region29: #{tpu_custom_call.1} parent=5 // pred_check
        %p218 = pneg %p217
      $region30: #{tpu_custom_call.1} parent=5 // pred_check_branch
        %220 = sbr.rel (%p218) target = $region32
      $region31: #{tpu_custom_call.1} parent=5 // pred_region
        // Predicated region
        $region33: #{tpu_custom_call.1} parent=31 // pred_check
          %p221 = pneg %p52
        $region34: #{tpu_custom_call.1} parent=31 // pred_check_branch
          %223 = sbr.rel (%p221) target = $region36
        $region35: #{tpu_custom_call.1} parent=31 // pred_region
          %s224 = sand.u32 %s42, 1
          %s225 = scalar_lea.sflag [#allocation3], %s224
          %s226 = sand.u32 %s42, 1
          %s227 = smul.addr %s226, 8
          %s228 = scalar_lea.vmem [#allocation2], %s227
          %230 = vsyncadd %s225, 0
          %s231 = smul.addr %s25, 2
          %s232 = sadd.s32 %s26, %s231
          %s233 = smul.addr %s232, 8
          %s234 = scalar_lea.hbm %s0, %s233
          %s236 = sshll.u32 %s234, 4
          %s237 = int_to_ptr.hbm [resolvable:$true] %s236
          %s238 = sshll.u32 %s228, 4
          %s239 = int_to_ptr.vmem [resolvable:$true] %s238
          %241 = dma.hbm_to_vmem [thread:$0]  %s237, 128, %s239, %s225
        $region36: #{tpu_custom_call.1} parent=31 // pred_fallthru
          _
      $region32: #{tpu_custom_call.1} parent=5 // pred_fallthru
        _
      %p242 = scmp.le.s32.totalorder 1, %s18
      %p243 = scmp.lt.s32.totalorder %s18, 5
      %p244 = pnand %p242, %p243
      %p245 = pneg %p244
      // Predicated region
      $region37: #{tpu_custom_call.1} parent=5 // pred_check
        _
      $region38: #{tpu_custom_call.1} parent=5 // pred_check_branch
        %247 = sbr.rel (%p244) target = $region40
      $region39: #{tpu_custom_call.1} parent=5 // pred_region
        %s248 = ssub.s32 %s18, 1
        %s249 = sand.u32 %s45, 1
        %s250 = scalar_lea.sflag [#allocation3], %s249
        %s251 = sand.u32 %s45, 1
        %s252 = smul.addr %s251, 8
        %s253 = scalar_lea.vmem [#allocation2], %s252
        // Predicated region
        $region41: #{tpu_custom_call.1} parent=39 // pred_check
          %p254 = pneg %p58
        $region42: #{tpu_custom_call.1} parent=39 // pred_check_branch
          %256 = sbr.rel (%p254) target = $region44
        $region43: #{tpu_custom_call.1} parent=39 // pred_region
          %258 = dma.done %s250, 128
        $region44: #{tpu_custom_call.1} parent=39 // pred_fallthru
          _
        // Predicated region
        $region45: #{tpu_custom_call.1} parent=39 // pred_check
          %p259 = pneg %p79
        $region46: #{tpu_custom_call.1} parent=39 // pred_check_branch
          %261 = sbr.rel (%p259) target = $region48
        $region47: #{tpu_custom_call.1} parent=39 // pred_region
          %263 = dma.done [#allocation6], 16
        $region48: #{tpu_custom_call.1} parent=39 // pred_fallthru
          _
        // Predicated region
        $region49: #{tpu_custom_call.1} parent=39 // pred_check
          %p264 = pneg %p121
        $region50: #{tpu_custom_call.1} parent=39 // pred_check_branch
          %266 = sbr.rel (%p264) target = $region52
        $region51: #{tpu_custom_call.1} parent=39 // pred_region
          %268 = dma.done [#allocation6], 512
        $region52: #{tpu_custom_call.1} parent=39 // pred_fallthru
          _
        %s269 = sand.u32 %s45, 1
        %s270 = scalar_lea.sflag [#allocation3], %s269
        %s271 = sand.u32 %s45, 1
        %s272 = smul.addr %s271, 8
        %s273 = scalar_lea.vmem [#allocation2], %s272
        %p274 = pneg %p58
        %p275 = pneg %p55
        %p276 = pneg %p79
        %p277 = pneg %p76
        %p278 = pneg %p100
        %p279 = pneg %p97
        %p280 = pneg %p121
        %p281 = pneg %p118
        %p282 = pneg %p142
        %p283 = pneg %p139
        %p284 = pneg %p170
        %p285 = pneg %p167
        %s286 = sand.u32 %s157, 1
        %s287 = scalar_lea.sflag [#allocation4], %s286
        %s288 = sand.u32 %s157, 1
        %s289 = smul.addr %s288, 8
        %s290 = scalar_lea.vmem [#allocation8], %s289
        %v291 = vld [vmem:[%s253] sm:$0xff]
        %vm292 = vcmask 261120
        %v293 = vsel %vm292, %v291, 0.0
        %294 = vadd.xlane.f32.xlu0 %v293
        %v295 = vpop.xlane.xlu0 %294
        %v296 = vrcp.pop 32.0
        %v297 = vmul.f32 32.0, %v296
        %v298 = vsub.f32 1.0, %v297
        %v299 = vmul.f32 %v296, %v298
        %v300 = vadd.f32 %v296, %v299
        %vm301 = vweird.f32 %v296
        %v302 = vsel %vm301, %v296, %v300
        %v303 = vmul.f32 %v295, %v302
        %v304 = vsub.f32 %v291, %v303
        %v305 = vmul.f32 %v304, %v304
        %v306 = vsel %vm292, %v305, 0.0
        %307 = vadd.xlane.f32.xlu0 %v306
        %v308 = vpop.xlane.xlu0 %307
        %v309 = vmul.f32 %v308, %v302
        %v310 = vadd.f32 %v309, 1e-05
        %v311 = vrsqrt.pop %v310
        %v312 = vmul.f32 %v311, %v310
        %v313 = vmul.f32 %v312, %v311
        %v314 = vmul.f32 0.5, %v313
        %v315 = vsub.f32 1.5, %v314
        %v316 = vmul.f32 %v311, %v315
        %vm317 = vweird.f32 %v310
        %vm318 = vweird.f32 %v311
        %vm319 = vmor %vm317, %vm318
        %v320 = vsel %vm319, %v311, %v316
        %v321 = vmul.f32 %v304, %v320
        %v322 = vld [vmem:[#allocation5] sm:$0x1]
        %v324 = vperm.slane %v322, 0
        %v326 = vmul.f32 %v321, %v324
        %v327 = vld [vmem:[%s2] sm:$0x1]
        %v329 = vperm.slane %v327, 0
        %v331 = vadd.f32 %v326, %v329
        %v332 = vld [vmem:[#allocation7] sm:$0xff]
        %v333 = vld [vmem:[#allocation7 + $0x8] sm:$0xff]
        %v334 = vld [vmem:[#allocation7 + $0x10] sm:$0xff]
        %v335 = vld [vmem:[#allocation7 + $0x18] sm:$0xff]
        %v336 = vld [vmem:[%s4] sm:$0x1]
        %v338 = vperm.slane %v336, 0
        %v341 = vsel %vm292, %v331, 0
        %343 = vmatpush.msra.mxu0 0.0
        %344 = vmatpush.msra.mxu0 0.0
        %345 = vmatpush.msra.mxu0 0.0
        %346 = vmatpush.msra.mxu0 0.0
        %347 = vmatpush.msra.mxu0 0.0
        %348 = vmatpush.msra.mxu0 0.0
        %349 = vmatpush.msra.mxu0 0.0
        %350 = vmatpush.msra.mxu0 0.0
        %351 = vmatpush.msra.mxu0 0.0
        %352 = vmatpush.msra.mxu0 0.0
        %353 = vmatpush.msra.mxu0 0.0
        %354 = vmatpush.msra.mxu0 0.0
        %355 = vmatpush.msra.mxu0 %v335
        %356 = vmatpush.msra.mxu0 %v334
        %357 = vmatpush.msra.mxu0 %v333
        %358 = vmatpush.msra.mxu0 %v332
        %359 = vmatmul.f32.gmra.mxu0 %v341
        %v360 = vpop.f32.mrf.mxu0
        %v361 = vadd.f32 %v338, %v360
        %362 = vdwg.mxu0
        %vm363 = vcmask 785408
        %364 = vst.msk [vmem:[%s290] sm:$0xff] %vm363, %v361
        %s365 = sand.u32 %s157, 1
        %s366 = scalar_lea.sflag [#allocation4], %s365
        %s367 = sand.u32 %s157, 1
        %s368 = smul.addr %s367, 8
        %s369 = scalar_lea.vmem [#allocation8], %s368
        // Predicated region
        $region53: #{tpu_custom_call.1} parent=39 // pred_check
          %p370 = pneg %p167
        $region54: #{tpu_custom_call.1} parent=39 // pred_check_branch
          %372 = sbr.rel (%p370) target = $region56
        $region55: #{tpu_custom_call.1} parent=39 // pred_region
          %374 = vsyncadd %s366, 0
          %s375 = smul.addr %s27, 2
          %s376 = sadd.s32 %s28, %s375
          %s377 = smul.addr %s376, 8
          %s378 = scalar_lea.hbm %s5, %s377
          %s380 = sshll.u32 %s369, 4
          %s381 = int_to_ptr.vmem [resolvable:$true] %s380
          %s382 = sshll.u32 %s378, 4
          %s383 = int_to_ptr.hbm [resolvable:$true] %s382
          %385 = dma.vmem_to_hbm [thread:$0]  %s381, 128, %s383, %s366
        $region56: #{tpu_custom_call.1} parent=39 // pred_fallthru
          _
      $region40: #{tpu_custom_call.1} parent=5 // pred_fallthru
        _
      %p386 = scmp.le.s32.totalorder 2, %s18
      // Predicated region
      $region57: #{tpu_custom_call.1} parent=5 // pred_check
        %p387 = pneg %p386
      $region58: #{tpu_custom_call.1} parent=5 // pred_check_branch
        %389 = sbr.rel (%p387) target = $region60
      $region59: #{tpu_custom_call.1} parent=5 // pred_region
        %s390 = ssub.s32 %s18, 2
        // Predicated region
        $region61: #{tpu_custom_call.1} parent=59 // pred_check
          %p391 = pneg %p173
        $region62: #{tpu_custom_call.1} parent=59 // pred_check_branch
          %393 = sbr.rel (%p391) target = $region64
        $region63: #{tpu_custom_call.1} parent=59 // pred_region
          %s394 = sand.u32 %s158, 1
          %s395 = scalar_lea.sflag [#allocation4], %s394
          %s396 = sand.u32 %s158, 1
          %s397 = smul.addr %s396, 8
          %s398 = scalar_lea.vmem [#allocation8], %s397
          %400 = dma.done %s395, 128
        $region64: #{tpu_custom_call.1} parent=59 // pred_fallthru
          _
      $region60: #{tpu_custom_call.1} parent=5 // pred_fallthru
        _
    $region6: #{tpu_custom_call.1} parent=1 // loop_footer
      %s22 = sadd.s32 1, %s18
    $region7: #{tpu_custom_call.1} parent=1 // loop_footer_branch
      %17 = sbr.rel target = $region3
    $region8: #{tpu_custom_call.1} parent=1 // loop_exit
      _
    %401 = vsyncpa [#allocation3], 1
    %s402 = scalar_lea.sflag [#allocation3], 1
    %403 = vsyncpa %s402, 1
    %404 = vsyncpa [#allocation6], 1
    %405 = vsyncpa [#allocation4], 1
    %s406 = scalar_lea.sflag [#allocation4], 1
    %407 = vsyncpa %s406, 1

</llo_original>
